<compile_context>
chip_gen: v5e
topology: v5e:2x2
jax: 0.10.0
libtpu: 0.0.40
codegen_flags: <defaults>
</compile_context>

<pallas_src>
import functools
import math

import jax
import jax.numpy as jnp
from jax.experimental import pallas as pl
from jax.experimental.pallas import tpu as pltpu


_LANE = 128                    # N tile (lane-dense, 128-wide: fine on v5e/v6e/v7x)
_K_TILE = 512                  # K tile when K is large
_M_TILE = 256                  # M tile when M is large
_LHS_RESIDENT_BUDGET = 4 * 1024 * 1024      # keep LHS VMEM-resident up to this
_VMEM_LIMIT_BYTES = 32 * 1024 * 1024        # safe on v7x (64 MiB physical / TC)


def _round_up(x, m):
    return ((x + m - 1) // m) * m


def _pad_kn(K, N):
    """(K_pad, tk, N_pad, tn) -- lane-dense N, K tiled only when large."""
    N_pad = _round_up(N, _LANE)
    if K <= _K_TILE:
        K_pad, tk = K, K
    else:
        tk = _K_TILE
        K_pad = _round_up(K, tk)
    return K_pad, tk, N_pad, _LANE


def _m_tiling(M):
    """(M_pad, tm): single full-M tile for small M, 256-row tiles otherwise."""
    if M <= _M_TILE:
        return M, M
    return _round_up(M, _M_TILE), _M_TILE


def _pad2(a, rows, cols):
    r, c = a.shape
    if (r, c) == (rows, cols):
        return a
    return jnp.pad(a, ((0, rows - r), (0, cols - c)))


def _pad3(a, d0, rows, cols):
    n, r, c = a.shape
    if (n, r, c) == (d0, rows, cols):
        return a
    return jnp.pad(a, ((0, d0 - n), (0, rows - r), (0, cols - c)))


# ----------------------------------------------------------------------------
# Kernels: plain  out = x @ W + b
# ----------------------------------------------------------------------------
def _dense_kernel_1k(x_ref, w_ref, b_ref, o_ref):
    """Single K step: no accumulator, direct store."""
    o_ref[...] = (
        jnp.dot(x_ref[...], w_ref[...], preferred_element_type=jnp.float32)
        + b_ref[...]).astype(o_ref.dtype)


def _dense_kernel_acc(x_ref, w_ref, b_ref, o_ref, acc_ref, *, tk, lhs_resident):
    """K-accumulated over grid axis 2; LHS optionally VMEM-resident (full K)."""
    k = pl.program_id(2)

    @pl.when(k == 0)
    def _():
        acc_ref[...] = jnp.zeros_like(acc_ref)

    if lhs_resident:
        x = x_ref[:, pl.ds(pl.multiple_of(k * tk, tk), tk)]
    else:
        x = x_ref[...]
    acc_ref[...] += jnp.dot(x, w_ref[...], preferred_element_type=jnp.float32)

    @pl.when(k == pl.num_programs(2) - 1)
    def _():
        o_ref[...] = (acc_ref[...] + b_ref[...]).astype(o_ref.dtype)


# ----------------------------------------------------------------------------
# Kernels: fused affine forward
#   central = x @ W + b, devs[i] = devs[i] @ W, err_out = err @ |W|
# One W tile load per (m, n[, k]) grid step serves all matmuls.
# ----------------------------------------------------------------------------
def _affine_kernel_1k(x_ref, d_ref, e_ref, w_ref, b_ref,
                      oc_ref, od_ref, oe_ref, *, n_dev):
    w = w_ref[...]
    oc_ref[...] = (jnp.dot(x_ref[...], w, preferred_element_type=jnp.float32)
                   + b_ref[...]).astype(oc_ref.dtype)
    for i in range(n_dev):                      # static unroll, 2-D MXU dots
        od_ref[i] = jnp.dot(d_ref[i], w,
                            preferred_element_type=jnp.float32).astype(od_ref.dtype)
    oe_ref[...] = jnp.dot(e_ref[...], jnp.abs(w),
                          preferred_element_type=jnp.float32).astype(oe_ref.dtype)


def _affine_kernel_acc(x_ref, d_ref, e_ref, w_ref, b_ref,
                       oc_ref, od_ref, oe_ref,
                       acc_c, acc_d, acc_e, *, tk, n_dev, lhs_resident):
    k = pl.program_id(2)

    @pl.when(k == 0)
    def _():
        acc_c[...] = jnp.zeros_like(acc_c)
        acc_d[...] = jnp.zeros_like(acc_d)
        acc_e[...] = jnp.zeros_like(acc_e)

    w = w_ref[...]
    if lhs_resident:
        sl = pl.ds(pl.multiple_of(k * tk, tk), tk)
        x = x_ref[:, sl]
        e = e_ref[:, sl]
    else:
        x = x_ref[...]
        e = e_ref[...]

    acc_c[...] += jnp.dot(x, w, preferred_element_type=jnp.float32)
    for i in range(n_dev):                      # static unroll, 2-D MXU dots
        if lhs_resident:
            d_i = d_ref[i, :, sl]
        else:
            d_i = d_ref[i]
        acc_d[i] += jnp.dot(d_i, w, preferred_element_type=jnp.float32)
    acc_e[...] += jnp.dot(e, jnp.abs(w), preferred_element_type=jnp.float32)

    @pl.when(k == pl.num_programs(2) - 1)
    def _():
        oc_ref[...] = (acc_c[...] + b_ref[...]).astype(oc_ref.dtype)
        od_ref[...] = acc_d[...].astype(od_ref.dtype)
        oe_ref[...] = acc_e[...].astype(oe_ref.dtype)


# ----------------------------------------------------------------------------
# Wrappers (W / bias arrive pre-padded from the layer)
# ----------------------------------------------------------------------------
def dense_forward(x, w_pad, b_pad, n_out):
    """central value path: x @ W + b."""
    M, K = x.shape
    K_pad, N_pad = w_pad.shape
    tk = K_pad if K_pad <= _K_TILE else _K_TILE
    tn = _LANE
    M_pad, tm = _m_tiling(M)
    num_k = K_pad // tk

    compute_dtype = w_pad.dtype
    out_dtype = x.dtype
    xp = _pad2(x.astype(compute_dtype), M_pad, K_pad)

    grid_mn = (M_pad // tm, N_pad // tn)

    if num_k == 1:
        out = pl.pallas_call(
            _dense_kernel_1k,
            out_shape=jax.ShapeDtypeStruct((M_pad, N_pad), out_dtype),
            grid_spec=pltpu.PrefetchScalarGridSpec(
                num_scalar_prefetch=0,
                grid=grid_mn,
                in_specs=[
                    pl.BlockSpec((tm, K_pad), lambda m, n: (m, 0)),   # x
                    pl.BlockSpec((K_pad, tn), lambda m, n: (0, n)),   # W
                    pl.BlockSpec((1, tn), lambda m, n: (0, n)),       # bias
                ],
                out_specs=pl.BlockSpec((tm, tn), lambda m, n: (m, n)),
            ),
            compiler_params=pltpu.CompilerParams(
                dimension_semantics=("parallel", "parallel"),
                vmem_limit_bytes=_VMEM_LIMIT_BYTES,
            ),
        )(xp, w_pad, b_pad)
    else:
        lhs_resident = tm * K_pad * xp.dtype.itemsize <= _LHS_RESIDENT_BUDGET
        if lhs_resident:
            x_spec = pl.BlockSpec((tm, K_pad), lambda m, n, k: (m, 0))
        else:
            x_spec = pl.BlockSpec((tm, tk), lambda m, n, k: (m, k))
        kernel = functools.partial(_dense_kernel_acc, tk=tk,
                                   lhs_resident=lhs_resident)
        out = pl.pallas_call(
            kernel,
            out_shape=jax.ShapeDtypeStruct((M_pad, N_pad), out_dtype),
            grid_spec=pltpu.PrefetchScalarGridSpec(
                num_scalar_prefetch=0,
                grid=grid_mn + (num_k,),
                in_specs=[
                    x_spec,                                            # x
                    pl.BlockSpec((tk, tn), lambda m, n, k: (k, n)),    # W
                    pl.BlockSpec((1, tn), lambda m, n, k: (0, n)),     # bias
                ],
                out_specs=pl.BlockSpec((tm, tn), lambda m, n, k: (m, n)),
                scratch_shapes=[pltpu.VMEM((tm, tn), jnp.float32)],
            ),
            compiler_params=pltpu.CompilerParams(
                dimension_semantics=("parallel", "parallel", "arbitrary"),
                vmem_limit_bytes=_VMEM_LIMIT_BYTES,
            ),
        )(xp, w_pad, b_pad)

    if (M_pad, N_pad) != (M, n_out):
        out = out[:M, :n_out]
    return out


def dense_forward_affine(x, partial_deviations, err, w_pad, b_pad, n_out):
    """Fused affine path: one kernel launch, W loaded once per (m,n[,k]) tile."""
    n_dev, M, K = partial_deviations.shape
    assert x.shape == (M, K) and err.shape == (M, K)
    K_pad, N_pad = w_pad.shape
    tk = K_pad if K_pad <= _K_TILE else _K_TILE
    tn = _LANE
    M_pad, tm = _m_tiling(M)
    num_k = K_pad // tk

    compute_dtype = w_pad.dtype
    out_dtype = x.dtype
    xp = _pad2(x.astype(compute_dtype), M_pad, K_pad)
    dp = _pad3(partial_deviations.astype(compute_dtype), n_dev, M_pad, K_pad)
    ep = _pad2(err.astype(compute_dtype), M_pad, K_pad)

    grid_mn = (M_pad // tm, N_pad // tn)
    out_shapes = (
        jax.ShapeDtypeStruct((M_pad, N_pad), out_dtype),           # central
        jax.ShapeDtypeStruct((n_dev, M_pad, N_pad), out_dtype),    # deviations
        jax.ShapeDtypeStruct((M_pad, N_pad), out_dtype),           # err
    )

    if num_k == 1:
        kernel = functools.partial(_affine_kernel_1k, n_dev=n_dev)
        grid = grid_mn
        in_specs = [
            pl.BlockSpec((tm, K_pad), lambda m, n: (m, 0)),            # x
            pl.BlockSpec((n_dev, tm, K_pad), lambda m, n: (0, m, 0)),  # devs
            pl.BlockSpec((tm, K_pad), lambda m, n: (m, 0)),            # err
            pl.BlockSpec((K_pad, tn), lambda m, n: (0, n)),            # W
            pl.BlockSpec((1, tn), lambda m, n: (0, n)),                # bias
        ]
        out_specs = (
            pl.BlockSpec((tm, tn), lambda m, n: (m, n)),
            pl.BlockSpec((n_dev, tm, tn), lambda m, n: (0, m, n)),
            pl.BlockSpec((tm, tn), lambda m, n: (m, n)),
        )
        scratch = []
        semantics = ("parallel", "parallel")
    else:
        lhs_bytes = (2 + n_dev) * tm * K_pad * xp.dtype.itemsize
        lhs_resident = lhs_bytes <= _LHS_RESIDENT_BUDGET
        kernel = functools.partial(_affine_kernel_acc, tk=tk, n_dev=n_dev,
                                   lhs_resident=lhs_resident)
        grid = grid_mn + (num_k,)
        if lhs_resident:
            x_spec = pl.BlockSpec((tm, K_pad), lambda m, n, k: (m, 0))
            d_spec = pl.BlockSpec((n_dev, tm, K_pad), lambda m, n, k: (0, m, 0))
            e_spec = pl.BlockSpec((tm, K_pad), lambda m, n, k: (m, 0))
        else:
            x_spec = pl.BlockSpec((tm, tk), lambda m, n, k: (m, k))
            d_spec = pl.BlockSpec((n_dev, tm, tk), lambda m, n, k: (0, m, k))
            e_spec = pl.BlockSpec((tm, tk), lambda m, n, k: (m, k))
        in_specs = [
            x_spec, d_spec, e_spec,
            pl.BlockSpec((tk, tn), lambda m, n, k: (k, n)),            # W
            pl.BlockSpec((1, tn), lambda m, n, k: (0, n)),             # bias
        ]
        out_specs = (
            pl.BlockSpec((tm, tn), lambda m, n, k: (m, n)),
            pl.BlockSpec((n_dev, tm, tn), lambda m, n, k: (0, m, n)),
            pl.BlockSpec((tm, tn), lambda m, n, k: (m, n)),
        )
        scratch = [
            pltpu.VMEM((tm, tn), jnp.float32),
            pltpu.VMEM((n_dev, tm, tn), jnp.float32),
            pltpu.VMEM((tm, tn), jnp.float32),
        ]
        semantics = ("parallel", "parallel", "arbitrary")

    oc, od, oe = pl.pallas_call(
        kernel,
        out_shape=out_shapes,
        grid_spec=pltpu.PrefetchScalarGridSpec(
            num_scalar_prefetch=0,
            grid=grid,
            in_specs=in_specs,
            out_specs=out_specs,
            scratch_shapes=scratch,
        ),
        compiler_params=pltpu.CompilerParams(
            dimension_semantics=semantics,
            vmem_limit_bytes=_VMEM_LIMIT_BYTES,
        ),
    )(xp, dp, ep, w_pad, b_pad)

    if (M_pad, N_pad) != (M, n_out):
        oc = oc[:M, :n_out]
        od = od[:, :M, :n_out]
        oe = oe[:M, :n_out]
    return oc, od, oe


# ----------------------------------------------------------------------------
# DenseLayer: parameter init (matches torch kaiming_uniform_(a=sqrt(5)) bounds)
# and forward() semantics for both the plain-tensor and affine-tuple inputs.
# (nan-check / add_to_bias / lerp-interpolation / print utilities are host-side
#  parameter bookkeeping, not part of the forward pass, and are omitted;
#  call _refresh_padded() after any such weight mutation.)
# ----------------------------------------------------------------------------
class DenseLayer:
    def __init__(self, size_in, size_out, key, weights_input=None,
                 bias_input=None, use_bf16=False):
        # torch: weights shape (size_in, size_out); _calculate_fan_in_and_fan_out
        # treats dim-1 as fan_in -> fan_in = size_out; kaiming_uniform with
        # a=sqrt(5) gives bound = 1/sqrt(fan_in).
        kw, kb = jax.random.split(key)
        fan_in = size_out
        bound = 1.0 / math.sqrt(fan_in) if fan_in > 0 else 0.0
        if weights_input is not None:
            assert weights_input.shape == (size_in, size_out)
            self.weights = jnp.asarray(weights_input, jnp.float32)
        else:
            self.weights = jax.random.uniform(
                kw, (size_in, size_out), jnp.float32, minval=-bound, maxval=bound)
        if bias_input is not None:
            assert bias_input.shape == (size_out,)
            self.bias = jnp.asarray(bias_input, jnp.float32)
        else:
            self.bias = jax.random.uniform(
                kb, (size_out,), jnp.float32, minval=-bound, maxval=bound)
        self.size_in = size_in
        self.size_out = size_out
        self._use_bf16 = use_bf16
        self._refresh_padded()

    def _refresh_padded(self):
        """Pad (and optionally bf16-cast) W / bias once; cached across calls."""
        K, N = self.size_in, self.size_out
        K_pad, _tk, N_pad, _tn = _pad_kn(K, N)
        w = self.weights
        if self._use_bf16:
            # opt-in on v6e/v7x: ~3x fewer MXU passes, half the W HBM bytes,
            # relaxed numerical tolerance (accumulation stays f32 in-kernel).
            w = w.astype(jnp.bfloat16)
        self._w_pad = _pad2(w, K_pad, N_pad)
        self._b_pad = _pad2(self.bias.reshape(1, N).astype(jnp.float32), 1, N_pad)

    def __call__(self, possibly_affine_input):
        if not isinstance(possibly_affine_input, tuple):
            return dense_forward(possibly_affine_input, self._w_pad, self._b_pad,
                                 self.size_out)

        central_value, partial_deviations, err = possibly_affine_input
        if partial_deviations is None and err is None:       # is_const case
            return (dense_forward(central_value, self._w_pad, self._b_pad,
                                  self.size_out), None, None)

        return dense_forward_affine(central_value, partial_deviations, err,
                                    self._w_pad, self._b_pad, self.size_out)


# ----------------------------------------------------------------------------
# Main
# ----------------------------------------------------------------------------
if __name__ == "__main__":
    key = jax.random.PRNGKey(0)
    k_param, k_x, k_dev, k_err, k_p2, k_x2, k_p3, k_x3, k_d3 = jax.random.split(key, 9)

    # ---- small shapes (single K step, single M tile) ----
    batch, size_in, size_out, n_dev = 8, 32, 32, 3
    layer = DenseLayer(size_in, size_out, k_param)

    x = jax.random.normal(k_x, (batch, size_in), jnp.float32)
    devs = jax.random.normal(k_dev, (n_dev, batch, size_in), jnp.float32)
    err = jax.random.normal(k_err, (batch, size_in), jnp.float32)

    out_plain = jax.block_until_ready(layer(x))
    out_const_c, out_const_d, out_const_e = layer((x, None, None))
    out_const_c = jax.block_until_ready(out_const_c)
    assert out_const_d is None and out_const_e is None
    out_c, out_d, out_e = jax.block_until_ready(layer((x, devs, err)))

    ref_c = x @ layer.weights + layer.bias
    ref_d = jnp.einsum("nbk,ko->nbo", devs, layer.weights)
    ref_e = err @ jnp.abs(layer.weights)
    assert jnp.allclose(out_plain, ref_c, atol=1e-5, rtol=1e-5)
    assert jnp.allclose(out_const_c, ref_c, atol=1e-5, rtol=1e-5)
    assert jnp.allclose(out_c, ref_c, atol=1e-5, rtol=1e-5)
    assert jnp.allclose(out_d, ref_d, atol=1e-5, rtol=1e-5)
    assert jnp.allclose(out_e, ref_e, atol=1e-5, rtol=1e-5)

    # ---- medium shapes: exercises M tiling + K accumulation + N padding ----
    M2, K2, N2 = 300, 1024, 200
    layer2 = DenseLayer(K2, N2, k_p2)
    x2 = jax.random.normal(k_x2, (M2, K2), jnp.float32)
    out2 = jax.block_until_ready(layer2(x2))
    ref2 = x2 @ layer2.weights + layer2.bias
    assert jnp.allclose(out2, ref2, atol=1e-3, rtol=1e-3)

    # ---- affine path with K accumulation (resident LHS) ----
    M3, K3, N3, nd3 = 8, 1024, 160, 2
    layer3 = DenseLayer(K3, N3, k_p3)
    x3 = jax.random.normal(k_x3, (M3, K3), jnp.float32)
    d3 = jax.random.normal(k_d3, (nd3, M3, K3), jnp.float32)
    e3 = jnp.abs(jax.random.normal(k_err, (M3, K3), jnp.float32))
    oc3, od3, oe3 = jax.block_until_ready(layer3((x3, d3, e3)))
    assert jnp.allclose(oc3, x3 @ layer3.weights + layer3.bias, atol=1e-3, rtol=1e-3)
    assert jnp.allclose(od3, jnp.einsum("nbk,ko->nbo", d3, layer3.weights),
                        atol=1e-3, rtol=1e-3)
    assert jnp.allclose(oe3, e3 @ jnp.abs(layer3.weights), atol=1e-3, rtol=1e-3)

    # ---- opt-in bf16 operand path (relaxed tolerance) ----
    layer_bf16 = DenseLayer(size_in, size_out, k_param, use_bf16=True)
    out_bf16 = jax.block_until_ready(layer_bf16(x))
    assert jnp.allclose(out_bf16, ref_c, atol=0.1, rtol=0.1)

    print("KERNEL_OK")
</pallas_src>

<mosaic_0001>
module attributes {stable_mosaic.version = 11 : i64} {
  func.func @_dense_kernel_1k(%arg0: i32, %arg1: i32, %arg2: memref<8x32xf32, #tpu.memory_space<vmem>>, %arg3: memref<32x128xf32, #tpu.memory_space<vmem>>, %arg4: memref<1x128xf32, #tpu.memory_space<vmem>>, %arg5: memref<8x128xf32, #tpu.memory_space<vmem>>) attributes {dimension_semantics = [#tpu.dimension_semantics<parallel>, #tpu.dimension_semantics<parallel>], iteration_bounds = array<i64: 1, 1>, scalar_prefetch = 0 : i64, scratch_operands = 0 : i64, tpu.core_type = #tpu.core_type<tc>, window_params = [{transform_indices = @transform_0, window_bounds = array<i64: 8, 32>}, {transform_indices = @transform_1, window_bounds = array<i64: 32, 128>}, {transform_indices = @transform_2, window_bounds = array<i64: 1, 128>}, {transform_indices = @transform_3, window_bounds = array<i64: 8, 128>}]} {
    %c0 = arith.constant 0 : index
    %c0_0 = arith.constant 0 : index
    %0 = vector.load %arg2[%c0, %c0_0] : memref<8x32xf32, #tpu.memory_space<vmem>>, vector<8x32xf32>
    %c0_1 = arith.constant 0 : index
    %c0_2 = arith.constant 0 : index
    %1 = vector.load %arg3[%c0_1, %c0_2] : memref<32x128xf32, #tpu.memory_space<vmem>>, vector<32x128xf32>
    %cst = arith.constant dense<0.000000e+00> : vector<8x128xf32>
    %2 = tpu.matmul %0, %1, %cst {dimension_numbers = #tpu.dot_dimension_numbers<[1], [0], [0], [1], [0, 0, 1, 1], [], []>} : vector<8x32xf32>, vector<32x128xf32>, vector<8x128xf32> -> vector<8x128xf32>
    %c0_3 = arith.constant 0 : index
    %c0_4 = arith.constant 0 : index
    %3 = vector.load %arg4[%c0_3, %c0_4] : memref<1x128xf32, #tpu.memory_space<vmem>>, vector<1x128xf32>
    %4 = vector.broadcast %3 : vector<1x128xf32> to vector<8x128xf32>
    %5 = arith.addf %2, %4 : vector<8x128xf32>
    %c0_5 = arith.constant 0 : index
    %c0_6 = arith.constant 0 : index
    %6 = vector.load %arg5[%c0_5, %c0_6] : memref<8x128xf32, #tpu.memory_space<vmem>>, vector<8x128xf32>
    tpu.vector_store %arg5[%c0_5, %c0_6], %5 {strides = array<i32>} : memref<8x128xf32, #tpu.memory_space<vmem>>, vector<8x128xf32>,
    return
  }
  func.func @transform_0(%arg0: i32, %arg1: i32) -> (i32, i32) {
    %c0_i32 = arith.constant 0 : i32
    %c0_i32_0 = arith.constant 0 : i32
    return %arg0, %c0_i32 : i32, i32
  }
  func.func @transform_1(%arg0: i32, %arg1: i32) -> (i32, i32) {
    %c0_i32 = arith.constant 0 : i32
    %c0_i32_0 = arith.constant 0 : i32
    return %c0_i32, %arg1 : i32, i32
  }
  func.func @transform_2(%arg0: i32, %arg1: i32) -> (i32, i32) {
    %c0_i32 = arith.constant 0 : i32
    %c0_i32_0 = arith.constant 0 : i32
    return %c0_i32, %arg1 : i32, i32
  }
  func.func @transform_3(%arg0: i32, %arg1: i32) -> (i32, i32) {
    %c0_i32 = arith.constant 0 : i32
    return %arg0, %arg1 : i32, i32
  }
}

</mosaic_0001>

<llo_original>
// kernel: tpu_custom_call.1
$region0: #{tpu_custom_call.1}
  #allocation0 [shape = 'u32[]', space=smem, size = 0x4, offset = 0x4, fixed_abs, tag = 'smem constant byte address 0x4 - core index']
  #allocation1 [shape = 'u32[72,128]{1,0:T(1,128)}', space=vmem, size = 0x9000, scoped, tag = 'internal scratch']
  %s0 = inlined_call_operand.hbm [shape: f32[8,32], index: 0, kind: input, shape index: {}]
  %s1 = inlined_call_operand.hbm [shape: f32[32,128], index: 1, kind: input, shape index: {}]
  %s2 = inlined_call_operand.vmem [shape: f32[1,128], index: 2, kind: input, shape index: {}]
  %s3 = inlined_call_operand.hbm [shape: f32[8,128], index: 3, kind: output, shape index: {}]
  %s4 = sld [smem:[#allocation0]]
  $region30: #{tpu_custom_call.1} parent=0
    _
  %s6 = ssub.s32 1, %s4
  %s7 = scalar_select 0, %s6, %s4
  $region1: #{tpu_custom_call.1} parent=0
    #allocation2 [shape = 'u8[4096]{0}', space=vmem, size = 0x1000, scoped, tag = 'input window, operand 0, single buffered']
    #allocation3 [shape = 's32[1]{0}', space=sflag, size = 0x4, scoped, tag = 'scoped memory for tpu_custom_call.1']
    #allocation4 [shape = 's32[1]{0}', space=sflag, size = 0x4, scoped, tag = 'scoped memory for tpu_custom_call.1']
    #allocation5 [shape = 'u8[16384]{0}', space=vmem, size = 0x4000, scoped, tag = 'input window, operand 1, single buffered']
    #allocation6 [shape = 's32[1]{0}', space=sflag, size = 0x4, scoped, tag = 'scoped memory for tpu_custom_call.1']
    #allocation7 [shape = 'u8[4096]{0}', space=vmem, size = 0x1000, scoped, tag = 'output window, operand 0, single buffered']
    %8 = vsyncpa [#allocation3], 0
    %9 = vsyncpa [#allocation6], 0
    %10 = vsyncpa [#allocation4], 0
    // Predicated region
    $region2: #{tpu_custom_call.1} parent=1 // pred_check
      _
    $region3: #{tpu_custom_call.1} parent=1 // pred_check_branch
      %12 = sbr.rel (0) target = $region5
    $region4: #{tpu_custom_call.1} parent=1 // pred_region
      %14 = vsyncadd [#allocation3], 0
      %s16 = sshll.u32 %s0, 4
      %s17 = int_to_ptr.hbm [resolvable:$true] %s16
      %s18 = sshll.u32 [#allocation2], 4
      %s19 = int_to_ptr.vmem [resolvable:$true] %s18
      %21 = dma.hbm_to_vmem [thread:$0]  %s17, 128, %s19, [#allocation3]
    $region5: #{tpu_custom_call.1} parent=1 // pred_fallthru
      _
    // Predicated region
    $region6: #{tpu_custom_call.1} parent=1 // pred_check
      _
    $region7: #{tpu_custom_call.1} parent=1 // pred_check_branch
      %23 = sbr.rel (0) target = $region9
    $region8: #{tpu_custom_call.1} parent=1 // pred_region
      %25 = vsyncadd [#allocation6], 0
      %s26 = sshll.u32 %s1, 4
      %s27 = int_to_ptr.hbm [resolvable:$true] %s26
      %s28 = sshll.u32 [#allocation5], 4
      %s29 = int_to_ptr.vmem [resolvable:$true] %s28
      %34 = dma.hbm_to_vmem [thread:$0]  %s27, 512, %s29, [#allocation6], 128, 128, 8
    $region9: #{tpu_custom_call.1} parent=1 // pred_fallthru
      _
    // Predicated region
    $region10: #{tpu_custom_call.1} parent=1 // pred_check
      _
    $region11: #{tpu_custom_call.1} parent=1 // pred_check_branch
      %36 = sbr.rel (0) target = $region13
    $region12: #{tpu_custom_call.1} parent=1 // pred_region
      _
    $region13: #{tpu_custom_call.1} parent=1 // pred_fallthru
      _
    // Predicated region
    $region14: #{tpu_custom_call.1} parent=1 // pred_check
      _
    $region15: #{tpu_custom_call.1} parent=1 // pred_check_branch
      %38 = sbr.rel (0) target = $region17
    $region16: #{tpu_custom_call.1} parent=1 // pred_region
      %40 = dma.done [#allocation3], 128
    $region17: #{tpu_custom_call.1} parent=1 // pred_fallthru
      _
    // Predicated region
    $region18: #{tpu_custom_call.1} parent=1 // pred_check
      _
    $region19: #{tpu_custom_call.1} parent=1 // pred_check_branch
      %42 = sbr.rel (0) target = $region21
    $region20: #{tpu_custom_call.1} parent=1 // pred_region
      %44 = dma.done [#allocation6], 512
    $region21: #{tpu_custom_call.1} parent=1 // pred_fallthru
      _
    %v45 = vld [vmem:[#allocation2] sm:$0xff]
    %v46 = vld [vmem:[#allocation5] sm:$0xff]
    %v47 = vld [vmem:[#allocation5 + $0x8] sm:$0xff]
    %v48 = vld [vmem:[#allocation5 + $0x10] sm:$0xff]
    %v49 = vld [vmem:[#allocation5 + $0x18] sm:$0xff]
    %v50 = vld [vmem:[%s2] sm:$0x1]
    %v52 = vperm.slane %v50, 0
    %vm54 = vcmask 261120
    %v56 = vsel %vm54, %v45, 0
    %58 = vmatpush.msra.mxu0 0.0
    %59 = vmatpush.msra.mxu0 0.0
    %60 = vmatpush.msra.mxu0 0.0
    %61 = vmatpush.msra.mxu0 0.0
    %62 = vmatpush.msra.mxu0 0.0
    %63 = vmatpush.msra.mxu0 0.0
    %64 = vmatpush.msra.mxu0 0.0
    %65 = vmatpush.msra.mxu0 0.0
    %66 = vmatpush.msra.mxu0 0.0
    %67 = vmatpush.msra.mxu0 0.0
    %68 = vmatpush.msra.mxu0 0.0
    %69 = vmatpush.msra.mxu0 0.0
    %70 = vmatpush.msra.mxu0 %v49
    %71 = vmatpush.msra.mxu0 %v48
    %72 = vmatpush.msra.mxu0 %v47
    %73 = vmatpush.msra.mxu0 %v46
    %74 = vmatmul.f32.gmra.mxu0 %v56
    %v75 = vpop.f32.mrf.mxu0
    %v76 = vadd.f32 %v52, %v75
    %77 = vdwg.mxu0
    %78 = vst [vmem:[#allocation7] sm:$0xff] %v76
    // Predicated region
    $region22: #{tpu_custom_call.1} parent=1 // pred_check
      _
    $region23: #{tpu_custom_call.1} parent=1 // pred_check_branch
      %80 = sbr.rel (0) target = $region25
    $region24: #{tpu_custom_call.1} parent=1 // pred_region
      %82 = vsyncadd [#allocation4], 0
      %s84 = sshll.u32 [#allocation7], 4
      %s85 = int_to_ptr.vmem [resolvable:$true] %s84
      %s86 = sshll.u32 %s3, 4
      %s87 = int_to_ptr.hbm [resolvable:$true] %s86
      %89 = dma.vmem_to_hbm [thread:$0]  %s85, 128, %s87, [#allocation4]
    $region25: #{tpu_custom_call.1} parent=1 // pred_fallthru
      _
    // Predicated region
    $region26: #{tpu_custom_call.1} parent=1 // pred_check
      _
    $region27: #{tpu_custom_call.1} parent=1 // pred_check_branch
      %91 = sbr.rel (0) target = $region29
    $region28: #{tpu_custom_call.1} parent=1 // pred_region
      %93 = dma.done [#allocation4], 128
    $region29: #{tpu_custom_call.1} parent=1 // pred_fallthru
      _
    %94 = vsyncpa [#allocation3], 1
    %95 = vsyncpa [#allocation6], 1
    %96 = vsyncpa [#allocation4], 1

</llo_original>
